<compile_context>
chip_gen: v5e
topology: v5e:2x2
jax: 0.10.0
libtpu: 0.0.40
codegen_flags: <defaults>
</compile_context>

<pallas_src>
import jax
import jax.numpy as jnp
from jax.experimental import pallas as pl
from jax.experimental.pallas import tpu as pltpu

D_IN = 784    # module.input_shape = (784,)
D_FEAT = 64   # encoder output / probe input
D_OUT = 10    # probe output


def _round_up(n, m):
    return ((n + m - 1) // m) * m


def collapse_params(w_enc, b_enc, w_probe, b_probe):
    """Fold the frozen linear backbone into the probe (valid only for a linear encoder).

    Call ONCE at setup time (hoisted out of the per-forward path).
    Returns f32 (784, 10) weight and f32 (1, 10) bias.
    """
    w_comb = jnp.dot(w_enc, w_probe, precision=jax.lax.Precision.HIGHEST)            # (784, 10)
    b_comb = jnp.dot(b_enc, w_probe, precision=jax.lax.Precision.HIGHEST) + b_probe  # (1, 10)
    return w_comb.astype(jnp.float32), b_comb.astype(jnp.float32)


def _fused_probe_kernel(x_ref, w_ref, b_ref, out_ref):
    # x_ref: (TM, 784) f32   w_ref: (784, 10) f32   b_ref: (1, 10) f32   out_ref: (TM, 10) f32
    y = jnp.dot(x_ref[...], w_ref[...], preferred_element_type=jnp.float32)  # MXU, f32 acc
    out_ref[...] = y + b_ref[...]                                            # f32 bias epilogue


def _device_defaults():
    """(default_tm, cores_per_chip) based on the TPU generation; conservative fallback."""
    try:
        kind = jax.devices()[0].device_kind.lower()
    except Exception:
        kind = ""
    if "v7" in kind:
        return 2048, 2          # v7x: ~3.2 TB/s per TC, 2 TCs/chip -> bigger tiles + split grid
    return 1024, 1              # v5e / v6e (and anything unknown): 1 TC, 1024 rows per tile


def _pick_tm(batch, tm, cores):
    tm = max(8, _round_up(tm, 8))
    if cores > 1 and batch >= 16:
        # Make sure the "parallel" batch axis has at least one tile per TensorCore on v7x,
        # otherwise the second core sits idle and half the chip's HBM bandwidth is forfeited.
        tm = min(tm, max(8, _round_up(pl.cdiv(batch, cores), 8)))
    return min(tm, _round_up(batch, 8))


def probe_with_backbone(x, w_comb, b_comb, *, tm=None):
    """Fused forward probe(encoder(x)) using pre-collapsed (frozen, linear) backbone params.

    x: (B, 784) f32.  w_comb: (784, 10) f32.  b_comb: (1, 10) f32.
    """
    B = x.shape[0]
    default_tm, cores = _device_defaults()
    tm = _pick_tm(B, default_tm if tm is None else tm, cores)
    grid = (pl.cdiv(B, tm),)

    return pl.pallas_call(
        _fused_probe_kernel,
        out_shape=jax.ShapeDtypeStruct((B, D_OUT), jnp.float32),
        grid_spec=pltpu.PrefetchScalarGridSpec(
            num_scalar_prefetch=0,
            grid=grid,
            in_specs=[
                pl.BlockSpec((tm, D_IN), lambda i: (i, 0)),      # x: streamed, double-buffered
                pl.BlockSpec((D_IN, D_OUT), lambda i: (0, 0)),   # VMEM-resident combined weight
                pl.BlockSpec((1, D_OUT), lambda i: (0, 0)),      # VMEM-resident combined bias
            ],
            out_specs=pl.BlockSpec((tm, D_OUT), lambda i: (i, 0)),
        ),
        compiler_params=pltpu.CompilerParams(dimension_semantics=("parallel",)),
    )(x, w_comb, b_comb)


def _init_linear(key, fan_in, fan_out):
    """Deterministic PyTorch-style nn.Linear init: U(-1/sqrt(fan_in), 1/sqrt(fan_in))."""
    kw, kb = jax.random.split(key)
    bound = 1.0 / jnp.sqrt(jnp.float32(fan_in))
    w = jax.random.uniform(kw, (fan_in, fan_out), jnp.float32, -bound, bound)
    b = jax.random.uniform(kb, (1, fan_out), jnp.float32, -bound, bound)
    return w, b


if __name__ == "__main__":
    key = jax.random.PRNGKey(0)
    k_x, k_enc, k_probe = jax.random.split(key, 3)

    B = 128                       # small demo batch
    x = jax.random.normal(k_x, (B, D_IN), jnp.float32)

    w_enc, b_enc = _init_linear(k_enc, D_IN, D_FEAT)           # synthetic frozen backbone
    w_probe, b_probe = _init_linear(k_probe, D_FEAT, D_OUT)    # nn.Linear(64, 10)

    # Collapse is hoisted out of the per-call path: done once at setup.
    w_comb, b_comb = collapse_params(w_enc, b_enc, w_probe, b_probe)

    # tm=64 -> 2 grid steps at B=128, exercising the streaming pipeline in the demo.
    out = probe_with_backbone(x, w_comb, b_comb, tm=64)
    out = jax.block_until_ready(out)
    assert out.shape == (B, D_OUT)
    assert jnp.all(jnp.isfinite(out))

    # Reference: the original two-stage full-f32 forward of the PyTorch module.
    fx = jnp.dot(x, w_enc, precision=jax.lax.Precision.HIGHEST) + b_enc
    ref_full = jnp.dot(fx, w_probe, precision=jax.lax.Precision.HIGHEST) + b_probe
    # The kernel streams f32; the only differences are MXU pass decomposition and the
    # (f32) backbone/probe collapse, so the tolerance is dominated by matmul precision.
    assert jnp.allclose(out, ref_full, atol=2e-2, rtol=2e-2)

    # Tight check against the same collapsed operands in pure-XLA highest precision.
    ref_collapsed = jnp.dot(x, w_comb, precision=jax.lax.Precision.HIGHEST) + b_comb
    assert jnp.allclose(out, ref_collapsed, atol=2e-2, rtol=2e-2)

    print("KERNEL_OK")
</pallas_src>

<mosaic_0001>
module attributes {stable_mosaic.version = 11 : i64} {
  func.func @_fused_probe_kernel(%arg0: i32, %arg1: memref<64x784xf32, #tpu.memory_space<vmem>>, %arg2: memref<784x10xf32, #tpu.memory_space<vmem>>, %arg3: memref<1x10xf32, #tpu.memory_space<vmem>>, %arg4: memref<64x10xf32, #tpu.memory_space<vmem>>) attributes {dimension_semantics = [#tpu.dimension_semantics<parallel>], iteration_bounds = array<i64: 2>, scalar_prefetch = 0 : i64, scratch_operands = 0 : i64, tpu.core_type = #tpu.core_type<tc>, window_params = [{transform_indices = @transform_0, window_bounds = array<i64: 64, 784>}, {pipeline_mode = #tpu.pipeline_mode<synchronous>, transform_indices = @transform_1, window_bounds = array<i64: 784, 10>}, {pipeline_mode = #tpu.pipeline_mode<synchronous>, transform_indices = @transform_2, window_bounds = array<i64: 1, 10>}, {transform_indices = @transform_3, window_bounds = array<i64: 64, 10>}]} {
    %c0 = arith.constant 0 : index
    %c0_0 = arith.constant 0 : index
    %0 = vector.load %arg1[%c0, %c0_0] : memref<64x784xf32, #tpu.memory_space<vmem>>, vector<64x784xf32>
    %c0_1 = arith.constant 0 : index
    %c0_2 = arith.constant 0 : index
    %1 = vector.load %arg2[%c0_1, %c0_2] : memref<784x10xf32, #tpu.memory_space<vmem>>, vector<784x10xf32>
    %cst = arith.constant dense<0.000000e+00> : vector<64x10xf32>
    %2 = tpu.matmul %0, %1, %cst {dimension_numbers = #tpu.dot_dimension_numbers<[1], [0], [0], [1], [0, 0, 1, 1], [], []>} : vector<64x784xf32>, vector<784x10xf32>, vector<64x10xf32> -> vector<64x10xf32>
    %c0_3 = arith.constant 0 : index
    %c0_4 = arith.constant 0 : index
    %3 = vector.load %arg3[%c0_3, %c0_4] : memref<1x10xf32, #tpu.memory_space<vmem>>, vector<1x10xf32>
    %4 = vector.broadcast %3 : vector<1x10xf32> to vector<64x10xf32>
    %5 = arith.addf %2, %4 : vector<64x10xf32>
    %c0_5 = arith.constant 0 : index
    %c0_6 = arith.constant 0 : index
    %6 = vector.load %arg4[%c0_5, %c0_6] : memref<64x10xf32, #tpu.memory_space<vmem>>, vector<64x10xf32>
    tpu.vector_store %arg4[%c0_5, %c0_6], %5 {strides = array<i32>} : memref<64x10xf32, #tpu.memory_space<vmem>>, vector<64x10xf32>,
    return
  }
  func.func @transform_0(%arg0: i32) -> (i32, i32) {
    %c0_i32 = arith.constant 0 : i32
    %c0_i32_0 = arith.constant 0 : i32
    return %arg0, %c0_i32 : i32, i32
  }
  func.func @transform_1(%arg0: i32) -> (i32, i32) {
    %c0_i32 = arith.constant 0 : i32
    %c0_i32_0 = arith.constant 0 : i32
    %c0_i32_1 = arith.constant 0 : i32
    return %c0_i32, %c0_i32_0 : i32, i32
  }
  func.func @transform_2(%arg0: i32) -> (i32, i32) {
    %c0_i32 = arith.constant 0 : i32
    %c0_i32_0 = arith.constant 0 : i32
    %c0_i32_1 = arith.constant 0 : i32
    return %c0_i32, %c0_i32_0 : i32, i32
  }
  func.func @transform_3(%arg0: i32) -> (i32, i32) {
    %c0_i32 = arith.constant 0 : i32
    %c0_i32_0 = arith.constant 0 : i32
    return %arg0, %c0_i32 : i32, i32
  }
}

</mosaic_0001>

<llo_original>
// kernel: tpu_custom_call.1
$region0: #{tpu_custom_call.1}
  #allocation0 [shape = 'u32[]', space=smem, size = 0x4, offset = 0x4, fixed_abs, tag = 'smem constant byte address 0x4 - core index']
  #allocation1 [shape = 'u32[72,128]{1,0:T(1,128)}', space=vmem, size = 0x9000, scoped, tag = 'internal scratch']
  %s0 = inlined_call_operand.vmem [shape: f32[128,784], index: 0, kind: input, shape index: {}]
  %s1 = inlined_call_operand.vmem [shape: f32[784,10], index: 1, kind: input, shape index: {}]
  %s2 = inlined_call_operand.vmem [shape: f32[1,10], index: 2, kind: input, shape index: {}]
  %s3 = inlined_call_operand.vmem [shape: f32[128,10], index: 3, kind: output, shape index: {}]
  %s4 = sld [smem:[#allocation0]]
  $region45: #{tpu_custom_call.1} parent=0
    _
  %s6 = ssub.s32 1, %s4
  %s7 = scalar_select 0, %s6, %s4
  loop: start=0, step=1, limit=4
  $region2: #{tpu_custom_call.1} parent=0 // loop_pre_header
    _
  $region3: #{tpu_custom_call.1} parent=0 // loop_header
    %s9 = sphi 0, %s13
    %p10 = scmp.ge.s32.totalorder %s9, 4
    %s19 = sphi 0, %s21
    %s22 = sphi 0, %s19
    %s23 = sphi 0, %s22
    %s39 = sphi 0, %s23
    %s43 = sphi 0, %s43
    %s45 = sphi 0, %s43
    %s46 = sphi 0, %s45
    %s60 = sphi 0, %s46
    %s64 = sphi 0, %s64
    %s66 = sphi 0, %s64
    %s67 = sphi 0, %s66
    %s81 = sphi 0, %s67
    %s87 = sphi 0, %s89
    %s90 = sphi 0, %s87
    %s91 = sphi 0, %s90
    %s107 = sphi 0, %s91
  $region4: #{tpu_custom_call.1} parent=0 // loop_header_branch
    %12 = sbr.rel (%p10) target = $region8
  $region5: #{tpu_custom_call.1} parent=0 // loop_body
    %s14 = ssub.s32 %s9, 1
    %s15 = ssub.s32 %s9, 2
    %s16 = sadd.s32 %s9, 1
    %s17 = ssub.s32 %s9, %s16
    %p18 = scmp.eq.s32.totalorder %s17, 0
    %s20 = sadd.s32 %s19, 1
    %s21 = scalar_select %p18, %s19, %s20
    %p24 = pneg %p18
    %p25 = scmp.eq.s32.totalorder %s9, 1
    %p26 = por %p24, %p25
    %p27 = scmp.ne.s32.totalorder %s19, %s22
    %p28 = scmp.eq.s32.totalorder %s9, 0
    %p29 = por %p27, %p28
    %p30 = scmp.ne.s32.totalorder %s19, %s22
    %p31 = scmp.eq.s32.totalorder %s14, 1
    %p32 = por %p30, %p31
    %p33 = scmp.ne.s32.totalorder %s22, %s23
    %p34 = scmp.eq.s32.totalorder %s14, 0
    %p35 = por %p33, %p34
    %p36 = scmp.ne.s32.totalorder %s22, %s23
    %p37 = scmp.eq.s32.totalorder %s15, 1
    %p38 = por %p36, %p37
    %p40 = scmp.ne.s32.totalorder %s23, %s39
    %p41 = scmp.eq.s32.totalorder %s15, 0
    %p42 = por %p40, %p41
    %s44 = sadd.s32 %s43, 1
    %p47 = scmp.eq.s32.totalorder %s9, 1
    %p48 = scmp.ne.s32.totalorder %s43, %s45
    %p49 = scmp.eq.s32.totalorder %s9, 0
    %p50 = por %p48, %p49
    %p51 = scmp.ne.s32.totalorder %s43, %s45
    %p52 = scmp.eq.s32.totalorder %s14, 1
    %p53 = por %p51, %p52
    %p54 = scmp.ne.s32.totalorder %s45, %s46
    %p55 = scmp.eq.s32.totalorder %s14, 0
    %p56 = por %p54, %p55
    %p57 = scmp.ne.s32.totalorder %s45, %s46
    %p58 = scmp.eq.s32.totalorder %s15, 1
    %p59 = por %p57, %p58
    %p61 = scmp.ne.s32.totalorder %s46, %s60
    %p62 = scmp.eq.s32.totalorder %s15, 0
    %p63 = por %p61, %p62
    %s65 = sadd.s32 %s64, 1
    %p68 = scmp.eq.s32.totalorder %s9, 1
    %p69 = scmp.ne.s32.totalorder %s64, %s66
    %p70 = scmp.eq.s32.totalorder %s9, 0
    %p71 = por %p69, %p70
    %p72 = scmp.ne.s32.totalorder %s64, %s66
    %p73 = scmp.eq.s32.totalorder %s14, 1
    %p74 = por %p72, %p73
    %p75 = scmp.ne.s32.totalorder %s66, %s67
    %p76 = scmp.eq.s32.totalorder %s14, 0
    %p77 = por %p75, %p76
    %p78 = scmp.ne.s32.totalorder %s66, %s67
    %p79 = scmp.eq.s32.totalorder %s15, 1
    %p80 = por %p78, %p79
    %p82 = scmp.ne.s32.totalorder %s67, %s81
    %p83 = scmp.eq.s32.totalorder %s15, 0
    %p84 = por %p82, %p83
    %s85 = ssub.s32 %s9, %s16
    %p86 = scmp.eq.s32.totalorder %s85, 0
    %s88 = sadd.s32 %s87, 1
    %s89 = scalar_select %p86, %s87, %s88
    %p92 = pneg %p86
    %p93 = scmp.eq.s32.totalorder %s9, 1
    %p94 = por %p92, %p93
    %p95 = scmp.ne.s32.totalorder %s87, %s90
    %p96 = scmp.eq.s32.totalorder %s9, 0
    %p97 = por %p95, %p96
    %p98 = scmp.ne.s32.totalorder %s87, %s90
    %p99 = scmp.eq.s32.totalorder %s14, 1
    %p100 = por %p98, %p99
    %p101 = scmp.ne.s32.totalorder %s90, %s91
    %p102 = scmp.eq.s32.totalorder %s14, 0
    %p103 = por %p101, %p102
    %p104 = scmp.ne.s32.totalorder %s90, %s91
    %p105 = scmp.eq.s32.totalorder %s15, 1
    %p106 = por %p104, %p105
    %p108 = scmp.ne.s32.totalorder %s91, %s107
    %p109 = scmp.eq.s32.totalorder %s15, 0
    %p110 = por %p108, %p109
    %p111 = scmp.le.s32.totalorder 1, %s9
    %p112 = scmp.lt.s32.totalorder %s9, 3
    %p113 = pnand %p111, %p112
    %p114 = pneg %p113
    // Predicated region
    $region9: #{tpu_custom_call.1} parent=5 // pred_check
      _
    $region10: #{tpu_custom_call.1} parent=5 // pred_check_branch
      %116 = sbr.rel (%p113) target = $region12
    $region11: #{tpu_custom_call.1} parent=5 // pred_region
      %s117 = ssub.s32 %s9, 1
      // Predicated region
      $region13: #{tpu_custom_call.1} parent=11 // pred_check
        %p118 = pneg %p56
      $region14: #{tpu_custom_call.1} parent=11 // pred_check_branch
        %120 = sbr.rel (%p118) target = $region16
      $region15: #{tpu_custom_call.1} parent=11 // pred_region
        _
      $region16: #{tpu_custom_call.1} parent=11 // pred_fallthru
        _
      // Predicated region
      $region17: #{tpu_custom_call.1} parent=11 // pred_check
        %p121 = pneg %p77
      $region18: #{tpu_custom_call.1} parent=11 // pred_check_branch
        %123 = sbr.rel (%p121) target = $region20
      $region19: #{tpu_custom_call.1} parent=11 // pred_region
        _
      $region20: #{tpu_custom_call.1} parent=11 // pred_fallthru
        _
    $region12: #{tpu_custom_call.1} parent=5 // pred_fallthru
      _
    %p124 = scmp.lt.s32.totalorder %s9, 2
    // Predicated region
    $region21: #{tpu_custom_call.1} parent=5 // pred_check
      %p125 = pneg %p124
    $region22: #{tpu_custom_call.1} parent=5 // pred_check_branch
      %127 = sbr.rel (%p125) target = $region24
    $region23: #{tpu_custom_call.1} parent=5 // pred_region
      // Predicated region
      $region25: #{tpu_custom_call.1} parent=23 // pred_check
        %p128 = pneg %p29
      $region26: #{tpu_custom_call.1} parent=23 // pred_check_branch
        %130 = sbr.rel (%p128) target = $region28
      $region27: #{tpu_custom_call.1} parent=23 // pred_region
        %s131 = smul.u32 8, %s9
        %p132 = scmp.lt.s32.totalorder %s131, 15
        %s133 = scalar_select %p132, %s131, 15
        %s134 = smul.addr %s133, 7
        %s135 = smul.addr %s134, 8
        %s136 = scalar_lea.vmem %s0, %s135
        %s137 = smul.u32 8, %s9
      $region28: #{tpu_custom_call.1} parent=23 // pred_fallthru
        _
    $region24: #{tpu_custom_call.1} parent=5 // pred_fallthru
      _
    %p138 = scmp.le.s32.totalorder 1, %s9
    %p139 = scmp.lt.s32.totalorder %s9, 3
    %p140 = pnand %p138, %p139
    %p141 = pneg %p140
    // Predicated region
    $region29: #{tpu_custom_call.1} parent=5 // pred_check
      _
    $region30: #{tpu_custom_call.1} parent=5 // pred_check_branch
      %143 = sbr.rel (%p140) target = $region32
    $region31: #{tpu_custom_call.1} parent=5 // pred_region
      %s144 = ssub.s32 %s9, 1
      %s145 = smul.u32 8, %s14
      %p146 = scmp.lt.s32.totalorder %s145, 15
      %s147 = scalar_select %p146, %s145, 15
      %s148 = smul.addr %s147, 7
      %s149 = smul.addr %s148, 8
      %s150 = scalar_lea.vmem %s0, %s149
      %p151 = pneg %p35
      %p152 = pneg %p32
      %p153 = pneg %p56
      %p154 = pneg %p53
      %p155 = pneg %p77
      %p156 = pneg %p74
      %p157 = pneg %p103
      %p158 = pneg %p100
      %s159 = smul.u32 8, %s14
      %p160 = scmp.lt.s32.totalorder %s159, 15
      %s161 = scalar_select %p160, %s159, 15
      %s162 = smul.addr %s161, 8
      %s163 = scalar_lea.vmem %s3, %s162
      %s164 = smul.u32 8, %s14
      %p165 = scmp.lt.s32.totalorder %s164, 15
      %s166 = scalar_select %p165, %s164, 15
      %s167 = smul.addr %s166, 7
      %s168 = smul.addr %s167, 8
      %s169 = scalar_lea.vmem %s0, %s168
      %s170 = smul.u32 8, %s14
      %s171 = smul.u32 8, %s14
      %p172 = scmp.lt.s32.totalorder %s171, 15
      %s173 = scalar_select %p172, %s171, 15
      %s174 = smul.addr %s173, 8
      %s175 = scalar_lea.vmem %s3, %s174
      %s176 = smul.u32 8, %s14
      %v177 = vld [vmem:[%s169] sm:$0xff]
      %v178 = vld [vmem:[%s169 + $0x8] sm:$0xff]
      %v179 = vld [vmem:[%s169 + $0x10] sm:$0xff]
      %v180 = vld [vmem:[%s169 + $0x18] sm:$0xff]
      %v181 = vld [vmem:[%s169 + $0x20] sm:$0xff]
      %v182 = vld [vmem:[%s169 + $0x28] sm:$0xff]
      %v183 = vld [vmem:[%s169 + $0x30] sm:$0xff]
      %v184 = vld [vmem:[%s169 + $0x38] sm:$0xff]
      %v185 = vld [vmem:[%s169 + $0x40] sm:$0xff]
      %v186 = vld [vmem:[%s169 + $0x48] sm:$0xff]
      %v187 = vld [vmem:[%s169 + $0x50] sm:$0xff]
      %v188 = vld [vmem:[%s169 + $0x58] sm:$0xff]
      %v189 = vld [vmem:[%s169 + $0x60] sm:$0xff]
      %v190 = vld [vmem:[%s169 + $0x68] sm:$0xff]
      %v191 = vld [vmem:[%s169 + $0x70] sm:$0xff]
      %v192 = vld [vmem:[%s169 + $0x78] sm:$0xff]
      %v193 = vld [vmem:[%s169 + $0x80] sm:$0xff]
      %v194 = vld [vmem:[%s169 + $0x88] sm:$0xff]
      %v195 = vld [vmem:[%s169 + $0x90] sm:$0xff]
      %v196 = vld [vmem:[%s169 + $0x98] sm:$0xff]
      %v197 = vld [vmem:[%s169 + $0xa0] sm:$0xff]
      %v198 = vld [vmem:[%s169 + $0xa8] sm:$0xff]
      %v199 = vld [vmem:[%s169 + $0xb0] sm:$0xff]
      %v200 = vld [vmem:[%s169 + $0xb8] sm:$0xff]
      %v201 = vld [vmem:[%s169 + $0xc0] sm:$0xff]
      %v202 = vld [vmem:[%s169 + $0xc8] sm:$0xff]
      %v203 = vld [vmem:[%s169 + $0xd0] sm:$0xff]
      %v204 = vld [vmem:[%s169 + $0xd8] sm:$0xff]
      %v205 = vld [vmem:[%s169 + $0xe0] sm:$0xff]
      %v206 = vld [vmem:[%s169 + $0xe8] sm:$0xff]
      %v207 = vld [vmem:[%s169 + $0xf0] sm:$0xff]
      %v208 = vld [vmem:[%s169 + $0xf8] sm:$0xff]
      %v209 = vld [vmem:[%s169 + $0x100] sm:$0xff]
      %v210 = vld [vmem:[%s169 + $0x108] sm:$0xff]
      %v211 = vld [vmem:[%s169 + $0x110] sm:$0xff]
      %v212 = vld [vmem:[%s169 + $0x118] sm:$0xff]
      %v213 = vld [vmem:[%s169 + $0x120] sm:$0xff]
      %v214 = vld [vmem:[%s169 + $0x128] sm:$0xff]
      %v215 = vld [vmem:[%s169 + $0x130] sm:$0xff]
      %v216 = vld [vmem:[%s169 + $0x138] sm:$0xff]
      %v217 = vld [vmem:[%s169 + $0x140] sm:$0xff]
      %v218 = vld [vmem:[%s169 + $0x148] sm:$0xff]
      %v219 = vld [vmem:[%s169 + $0x150] sm:$0xff]
      %v220 = vld [vmem:[%s169 + $0x158] sm:$0xff]
      %v221 = vld [vmem:[%s169 + $0x160] sm:$0xff]
      %v222 = vld [vmem:[%s169 + $0x168] sm:$0xff]
      %v223 = vld [vmem:[%s169 + $0x170] sm:$0xff]
      %v224 = vld [vmem:[%s169 + $0x178] sm:$0xff]
      %v225 = vld [vmem:[%s169 + $0x180] sm:$0xff]
      %v226 = vld [vmem:[%s169 + $0x188] sm:$0xff]
      %v227 = vld [vmem:[%s169 + $0x190] sm:$0xff]
      %v228 = vld [vmem:[%s169 + $0x198] sm:$0xff]
      %v229 = vld [vmem:[%s169 + $0x1a0] sm:$0xff]
      %v230 = vld [vmem:[%s169 + $0x1a8] sm:$0xff]
      %v231 = vld [vmem:[%s169 + $0x1b0] sm:$0xff]
      %v232 = vld [vmem:[%s169 + $0x1b8] sm:$0xff]
      %v233 = vld [vmem:[%s1] sm:$0xff]
      %v234 = vld [vmem:[%s1 + $0x8] sm:$0xff]
      %v235 = vld [vmem:[%s1 + $0x10] sm:$0xff]
      %v236 = vld [vmem:[%s1 + $0x18] sm:$0xff]
      %v237 = vld [vmem:[%s1 + $0x20] sm:$0xff]
      %v238 = vld [vmem:[%s1 + $0x28] sm:$0xff]
      %v239 = vld [vmem:[%s1 + $0x30] sm:$0xff]
      %v240 = vld [vmem:[%s1 + $0x38] sm:$0xff]
      %v241 = vld [vmem:[%s1 + $0x40] sm:$0xff]
      %v242 = vld [vmem:[%s1 + $0x48] sm:$0xff]
      %v243 = vld [vmem:[%s1 + $0x50] sm:$0xff]
      %v244 = vld [vmem:[%s1 + $0x58] sm:$0xff]
      %v245 = vld [vmem:[%s1 + $0x60] sm:$0xff]
      %v246 = vld [vmem:[%s1 + $0x68] sm:$0xff]
      %v247 = vld [vmem:[%s1 + $0x70] sm:$0xff]
      %v248 = vld [vmem:[%s1 + $0x78] sm:$0xff]
      %v249 = vld [vmem:[%s1 + $0x80] sm:$0xff]
      %v250 = vld [vmem:[%s1 + $0x88] sm:$0xff]
      %v251 = vld [vmem:[%s1 + $0x90] sm:$0xff]
      %v252 = vld [vmem:[%s1 + $0x98] sm:$0xff]
      %v253 = vld [vmem:[%s1 + $0xa0] sm:$0xff]
      %v254 = vld [vmem:[%s1 + $0xa8] sm:$0xff]
      %v255 = vld [vmem:[%s1 + $0xb0] sm:$0xff]
      %v256 = vld [vmem:[%s1 + $0xb8] sm:$0xff]
      %v257 = vld [vmem:[%s1 + $0xc0] sm:$0xff]
      %v258 = vld [vmem:[%s1 + $0xc8] sm:$0xff]
      %v259 = vld [vmem:[%s1 + $0xd0] sm:$0xff]
      %v260 = vld [vmem:[%s1 + $0xd8] sm:$0xff]
      %v261 = vld [vmem:[%s1 + $0xe0] sm:$0xff]
      %v262 = vld [vmem:[%s1 + $0xe8] sm:$0xff]
      %v263 = vld [vmem:[%s1 + $0xf0] sm:$0xff]
      %v264 = vld [vmem:[%s1 + $0xf8] sm:$0xff]
      %v265 = vld [vmem:[%s1 + $0x100] sm:$0xff]
      %v266 = vld [vmem:[%s1 + $0x108] sm:$0xff]
      %v267 = vld [vmem:[%s1 + $0x110] sm:$0xff]
      %v268 = vld [vmem:[%s1 + $0x118] sm:$0xff]
      %v269 = vld [vmem:[%s1 + $0x120] sm:$0xff]
      %v270 = vld [vmem:[%s1 + $0x128] sm:$0xff]
      %v271 = vld [vmem:[%s1 + $0x130] sm:$0xff]
      %v272 = vld [vmem:[%s1 + $0x138] sm:$0xff]
      %v273 = vld [vmem:[%s1 + $0x140] sm:$0xff]
      %v274 = vld [vmem:[%s1 + $0x148] sm:$0xff]
      %v275 = vld [vmem:[%s1 + $0x150] sm:$0xff]
      %v276 = vld [vmem:[%s1 + $0x158] sm:$0xff]
      %v277 = vld [vmem:[%s1 + $0x160] sm:$0xff]
      %v278 = vld [vmem:[%s1 + $0x168] sm:$0xff]
      %v279 = vld [vmem:[%s1 + $0x170] sm:$0xff]
      %v280 = vld [vmem:[%s1 + $0x178] sm:$0xff]
      %v281 = vld [vmem:[%s1 + $0x180] sm:$0xff]
      %v282 = vld [vmem:[%s1 + $0x188] sm:$0xff]
      %v283 = vld [vmem:[%s1 + $0x190] sm:$0xff]
      %v284 = vld [vmem:[%s1 + $0x198] sm:$0xff]
      %v285 = vld [vmem:[%s1 + $0x1a0] sm:$0xff]
      %v286 = vld [vmem:[%s1 + $0x1a8] sm:$0xff]
      %v287 = vld [vmem:[%s1 + $0x1b0] sm:$0xff]
      %v288 = vld [vmem:[%s1 + $0x1b8] sm:$0xff]
      %v289 = vld [vmem:[%s1 + $0x1c0] sm:$0xff]
      %v290 = vld [vmem:[%s1 + $0x1c8] sm:$0xff]
      %v291 = vld [vmem:[%s1 + $0x1d0] sm:$0xff]
      %v292 = vld [vmem:[%s1 + $0x1d8] sm:$0xff]
      %v293 = vld [vmem:[%s1 + $0x1e0] sm:$0xff]
      %v294 = vld [vmem:[%s1 + $0x1e8] sm:$0xff]
      %v295 = vld [vmem:[%s1 + $0x1f0] sm:$0xff]
      %v296 = vld [vmem:[%s1 + $0x1f8] sm:$0xff]
      %v297 = vld [vmem:[%s1 + $0x200] sm:$0xff]
      %v298 = vld [vmem:[%s1 + $0x208] sm:$0xff]
      %v299 = vld [vmem:[%s1 + $0x210] sm:$0xff]
      %v300 = vld [vmem:[%s1 + $0x218] sm:$0xff]
      %v301 = vld [vmem:[%s1 + $0x220] sm:$0xff]
      %v302 = vld [vmem:[%s1 + $0x228] sm:$0xff]
      %v303 = vld [vmem:[%s1 + $0x230] sm:$0xff]
      %v304 = vld [vmem:[%s1 + $0x238] sm:$0xff]
      %v305 = vld [vmem:[%s1 + $0x240] sm:$0xff]
      %v306 = vld [vmem:[%s1 + $0x248] sm:$0xff]
      %v307 = vld [vmem:[%s1 + $0x250] sm:$0xff]
      %v308 = vld [vmem:[%s1 + $0x258] sm:$0xff]
      %v309 = vld [vmem:[%s1 + $0x260] sm:$0xff]
      %v310 = vld [vmem:[%s1 + $0x268] sm:$0xff]
      %v311 = vld [vmem:[%s1 + $0x270] sm:$0xff]
      %v312 = vld [vmem:[%s1 + $0x278] sm:$0xff]
      %v313 = vld [vmem:[%s1 + $0x280] sm:$0xff]
      %v314 = vld [vmem:[%s1 + $0x288] sm:$0xff]
      %v315 = vld [vmem:[%s1 + $0x290] sm:$0xff]
      %v316 = vld [vmem:[%s1 + $0x298] sm:$0xff]
      %v317 = vld [vmem:[%s1 + $0x2a0] sm:$0xff]
      %v318 = vld [vmem:[%s1 + $0x2a8] sm:$0xff]
      %v319 = vld [vmem:[%s1 + $0x2b0] sm:$0xff]
      %v320 = vld [vmem:[%s1 + $0x2b8] sm:$0xff]
      %v321 = vld [vmem:[%s1 + $0x2c0] sm:$0xff]
      %v322 = vld [vmem:[%s1 + $0x2c8] sm:$0xff]
      %v323 = vld [vmem:[%s1 + $0x2d0] sm:$0xff]
      %v324 = vld [vmem:[%s1 + $0x2d8] sm:$0xff]
      %v325 = vld [vmem:[%s1 + $0x2e0] sm:$0xff]
      %v326 = vld [vmem:[%s1 + $0x2e8] sm:$0xff]
      %v327 = vld [vmem:[%s1 + $0x2f0] sm:$0xff]
      %v328 = vld [vmem:[%s1 + $0x2f8] sm:$0xff]
      %v329 = vld [vmem:[%s1 + $0x300] sm:$0xff]
      %v330 = vld [vmem:[%s1 + $0x308] sm:$0xff]
      %v331 = vld [vmem:[%s2] sm:$0x1]
      %v333 = vperm.slane %v331, 0
      %vm335 = vcmask 130048
      %v337 = vsel %vm335, %v183, 0
      %v340 = vsel %vm335, %v190, 0
      %v343 = vsel %vm335, %v197, 0
      %v346 = vsel %vm335, %v204, 0
      %v349 = vsel %vm335, %v211, 0
      %v352 = vsel %vm335, %v218, 0
      %v355 = vsel %vm335, %v225, 0
      %v358 = vsel %vm335, %v232, 0
      %360 = vmatpush.msra.mxu0 %v248
      %361 = vmatpush.msra.mxu0 %v247
      %362 = vmatpush.msra.mxu0 %v246
      %363 = vmatpush.msra.mxu0 %v245
      %364 = vmatpush.msra.mxu0 %v244
      %365 = vmatpush.msra.mxu0 %v243
      %366 = vmatpush.msra.mxu0 %v242
      %367 = vmatpush.msra.mxu0 %v241
      %368 = vmatpush.msra.mxu0 %v240
      %369 = vmatpush.msra.mxu0 %v239
      %370 = vmatpush.msra.mxu0 %v238
      %371 = vmatpush.msra.mxu0 %v237
      %372 = vmatpush.msra.mxu0 %v236
      %373 = vmatpush.msra.mxu0 %v235
      %374 = vmatpush.msra.mxu0 %v234
      %375 = vmatpush.msra.mxu0 %v233
      %376 = vmatmul.f32.gmra.mxu0 %v177
      %v377 = vpop.f32.mrf.mxu0
      %v378 = vadd.f32 %v333, %v377
      %379 = vmatmul.f32.gmra.mxu0 %v184
      %v380 = vpop.f32.mrf.mxu0
      %v381 = vadd.f32 %v333, %v380
      %382 = vmatmul.f32.gmra.mxu0 %v191
      %v383 = vpop.f32.mrf.mxu0
      %v384 = vadd.f32 %v333, %v383
      %385 = vmatmul.f32.gmra.mxu0 %v198
      %v386 = vpop.f32.mrf.mxu0
      %v387 = vadd.f32 %v333, %v386
      %388 = vmatmul.f32.gmra.mxu0 %v205
      %v389 = vpop.f32.mrf.mxu0
      %v390 = vadd.f32 %v333, %v389
      %391 = vmatmul.f32.gmra.mxu0 %v212
      %v392 = vpop.f32.mrf.mxu0
      %v393 = vadd.f32 %v333, %v392
      %394 = vmatmul.f32.gmra.mxu0 %v219
      %v395 = vpop.f32.mrf.mxu0
      %v396 = vadd.f32 %v333, %v395
      %397 = vmatmul.f32.gmra.mxu0 %v226
      %v398 = vpop.f32.mrf.mxu0
      %v399 = vadd.f32 %v333, %v398
      %400 = vdwg.mxu0
      %401 = vmatpush.msra.mxu0 %v264
      %402 = vmatpush.msra.mxu0 %v263
      %403 = vmatpush.msra.mxu0 %v262
      %404 = vmatpush.msra.mxu0 %v261
      %405 = vmatpush.msra.mxu0 %v260
      %406 = vmatpush.msra.mxu0 %v259
      %407 = vmatpush.msra.mxu0 %v258
      %408 = vmatpush.msra.mxu0 %v257
      %409 = vmatpush.msra.mxu0 %v256
      %410 = vmatpush.msra.mxu0 %v255
      %411 = vmatpush.msra.mxu0 %v254
      %412 = vmatpush.msra.mxu0 %v253
      %413 = vmatpush.msra.mxu0 %v252
      %414 = vmatpush.msra.mxu0 %v251
      %415 = vmatpush.msra.mxu0 %v250
      %416 = vmatpush.msra.mxu0 %v249
      %417 = vmatmul.f32.gmra.mxu0 %v178
      %v418 = vpop.f32.mrf.mxu0
      %v419 = vadd.f32 %v378, %v418
      %420 = vmatmul.f32.gmra.mxu0 %v185
      %v421 = vpop.f32.mrf.mxu0
      %v422 = vadd.f32 %v381, %v421
      %423 = vmatmul.f32.gmra.mxu0 %v192
      %v424 = vpop.f32.mrf.mxu0
      %v425 = vadd.f32 %v384, %v424
      %426 = vmatmul.f32.gmra.mxu0 %v199
      %v427 = vpop.f32.mrf.mxu0
      %v428 = vadd.f32 %v387, %v427
      %429 = vmatmul.f32.gmra.mxu0 %v206
      %v430 = vpop.f32.mrf.mxu0
      %v431 = vadd.f32 %v390, %v430
      %432 = vmatmul.f32.gmra.mxu0 %v213
      %v433 = vpop.f32.mrf.mxu0
      %v434 = vadd.f32 %v393, %v433
      %435 = vmatmul.f32.gmra.mxu0 %v220
      %v436 = vpop.f32.mrf.mxu0
      %v437 = vadd.f32 %v396, %v436
      %438 = vmatmul.f32.gmra.mxu0 %v227
      %v439 = vpop.f32.mrf.mxu0
      %v440 = vadd.f32 %v399, %v439
      %441 = vdwg.mxu0
      %442 = vmatpush.msra.mxu0 %v280
      %443 = vmatpush.msra.mxu0 %v279
      %444 = vmatpush.msra.mxu0 %v278
      %445 = vmatpush.msra.mxu0 %v277
      %446 = vmatpush.msra.mxu0 %v276
      %447 = vmatpush.msra.mxu0 %v275
      %448 = vmatpush.msra.mxu0 %v274
      %449 = vmatpush.msra.mxu0 %v273
      %450 = vmatpush.msra.mxu0 %v272
      %451 = vmatpush.msra.mxu0 %v271
      %452 = vmatpush.msra.mxu0 %v270
      %453 = vmatpush.msra.mxu0 %v269
      %454 = vmatpush.msra.mxu0 %v268
      %455 = vmatpush.msra.mxu0 %v267
      %456 = vmatpush.msra.mxu0 %v266
      %457 = vmatpush.msra.mxu0 %v265
      %458 = vmatmul.f32.gmra.mxu0 %v179
      %v459 = vpop.f32.mrf.mxu0
      %v460 = vadd.f32 %v419, %v459
      %461 = vmatmul.f32.gmra.mxu0 %v186
      %v462 = vpop.f32.mrf.mxu0
      %v463 = vadd.f32 %v422, %v462
      %464 = vmatmul.f32.gmra.mxu0 %v193
      %v465 = vpop.f32.mrf.mxu0
      %v466 = vadd.f32 %v425, %v465
      %467 = vmatmul.f32.gmra.mxu0 %v200
      %v468 = vpop.f32.mrf.mxu0
      %v469 = vadd.f32 %v428, %v468
      %470 = vmatmul.f32.gmra.mxu0 %v207
      %v471 = vpop.f32.mrf.mxu0
      %v472 = vadd.f32 %v431, %v471
      %473 = vmatmul.f32.gmra.mxu0 %v214
      %v474 = vpop.f32.mrf.mxu0
      %v475 = vadd.f32 %v434, %v474
      %476 = vmatmul.f32.gmra.mxu0 %v221
      %v477 = vpop.f32.mrf.mxu0
      %v478 = vadd.f32 %v437, %v477
      %479 = vmatmul.f32.gmra.mxu0 %v228
      %v480 = vpop.f32.mrf.mxu0
      %v481 = vadd.f32 %v440, %v480
      %482 = vdwg.mxu0
      %483 = vmatpush.msra.mxu0 %v296
      %484 = vmatpush.msra.mxu0 %v295
      %485 = vmatpush.msra.mxu0 %v294
      %486 = vmatpush.msra.mxu0 %v293
      %487 = vmatpush.msra.mxu0 %v292
      %488 = vmatpush.msra.mxu0 %v291
      %489 = vmatpush.msra.mxu0 %v290
      %490 = vmatpush.msra.mxu0 %v289
      %491 = vmatpush.msra.mxu0 %v288
      %492 = vmatpush.msra.mxu0 %v287
      %493 = vmatpush.msra.mxu0 %v286
      %494 = vmatpush.msra.mxu0 %v285
      %495 = vmatpush.msra.mxu0 %v284
      %496 = vmatpush.msra.mxu0 %v283
      %497 = vmatpush.msra.mxu0 %v282
      %498 = vmatpush.msra.mxu0 %v281
      %499 = vmatmul.f32.gmra.mxu0 %v180
      %v500 = vpop.f32.mrf.mxu0
      %v501 = vadd.f32 %v460, %v500
      %502 = vmatmul.f32.gmra.mxu0 %v187
      %v503 = vpop.f32.mrf.mxu0
      %v504 = vadd.f32 %v463, %v503
      %505 = vmatmul.f32.gmra.mxu0 %v194
      %v506 = vpop.f32.mrf.mxu0
      %v507 = vadd.f32 %v466, %v506
      %508 = vmatmul.f32.gmra.mxu0 %v201
      %v509 = vpop.f32.mrf.mxu0
      %v510 = vadd.f32 %v469, %v509
      %511 = vmatmul.f32.gmra.mxu0 %v208
      %v512 = vpop.f32.mrf.mxu0
      %v513 = vadd.f32 %v472, %v512
      %514 = vmatmul.f32.gmra.mxu0 %v215
      %v515 = vpop.f32.mrf.mxu0
      %v516 = vadd.f32 %v475, %v515
      %517 = vmatmul.f32.gmra.mxu0 %v222
      %v518 = vpop.f32.mrf.mxu0
      %v519 = vadd.f32 %v478, %v518
      %520 = vmatmul.f32.gmra.mxu0 %v229
      %v521 = vpop.f32.mrf.mxu0
      %v522 = vadd.f32 %v481, %v521
      %523 = vdwg.mxu0
      %524 = vmatpush.msra.mxu0 %v312
      %525 = vmatpush.msra.mxu0 %v311
      %526 = vmatpush.msra.mxu0 %v310
      %527 = vmatpush.msra.mxu0 %v309
      %528 = vmatpush.msra.mxu0 %v308
      %529 = vmatpush.msra.mxu0 %v307
      %530 = vmatpush.msra.mxu0 %v306
      %531 = vmatpush.msra.mxu0 %v305
      %532 = vmatpush.msra.mxu0 %v304
      %533 = vmatpush.msra.mxu0 %v303
      %534 = vmatpush.msra.mxu0 %v302
      %535 = vmatpush.msra.mxu0 %v301
      %536 = vmatpush.msra.mxu0 %v300
      %537 = vmatpush.msra.mxu0 %v299
      %538 = vmatpush.msra.mxu0 %v298
      %539 = vmatpush.msra.mxu0 %v297
      %540 = vmatmul.f32.gmra.mxu0 %v181
      %v541 = vpop.f32.mrf.mxu0
      %v542 = vadd.f32 %v501, %v541
      %543 = vmatmul.f32.gmra.mxu0 %v188
      %v544 = vpop.f32.mrf.mxu0
      %v545 = vadd.f32 %v504, %v544
      %546 = vmatmul.f32.gmra.mxu0 %v195
      %v547 = vpop.f32.mrf.mxu0
      %v548 = vadd.f32 %v507, %v547
      %549 = vmatmul.f32.gmra.mxu0 %v202
      %v550 = vpop.f32.mrf.mxu0
      %v551 = vadd.f32 %v510, %v550
      %552 = vmatmul.f32.gmra.mxu0 %v209
      %v553 = vpop.f32.mrf.mxu0
      %v554 = vadd.f32 %v513, %v553
      %555 = vmatmul.f32.gmra.mxu0 %v216
      %v556 = vpop.f32.mrf.mxu0
      %v557 = vadd.f32 %v516, %v556
      %558 = vmatmul.f32.gmra.mxu0 %v223
      %v559 = vpop.f32.mrf.mxu0
      %v560 = vadd.f32 %v519, %v559
      %561 = vmatmul.f32.gmra.mxu0 %v230
      %v562 = vpop.f32.mrf.mxu0
      %v563 = vadd.f32 %v522, %v562
      %564 = vdwg.mxu0
      %565 = vmatpush.msra.mxu0 %v328
      %566 = vmatpush.msra.mxu0 %v327
      %567 = vmatpush.msra.mxu0 %v326
      %568 = vmatpush.msra.mxu0 %v325
      %569 = vmatpush.msra.mxu0 %v324
      %570 = vmatpush.msra.mxu0 %v323
      %571 = vmatpush.msra.mxu0 %v322
      %572 = vmatpush.msra.mxu0 %v321
      %573 = vmatpush.msra.mxu0 %v320
      %574 = vmatpush.msra.mxu0 %v319
      %575 = vmatpush.msra.mxu0 %v318
      %576 = vmatpush.msra.mxu0 %v317
      %577 = vmatpush.msra.mxu0 %v316
      %578 = vmatpush.msra.mxu0 %v315
      %579 = vmatpush.msra.mxu0 %v314
      %580 = vmatpush.msra.mxu0 %v313
      %581 = vmatmul.f32.gmra.mxu0 %v182
      %v582 = vpop.f32.mrf.mxu0
      %v583 = vadd.f32 %v542, %v582
      %584 = vmatmul.f32.gmra.mxu0 %v189
      %v585 = vpop.f32.mrf.mxu0
      %v586 = vadd.f32 %v545, %v585
      %587 = vmatmul.f32.gmra.mxu0 %v196
      %v588 = vpop.f32.mrf.mxu0
      %v589 = vadd.f32 %v548, %v588
      %590 = vmatmul.f32.gmra.mxu0 %v203
      %v591 = vpop.f32.mrf.mxu0
      %v592 = vadd.f32 %v551, %v591
      %593 = vmatmul.f32.gmra.mxu0 %v210
      %v594 = vpop.f32.mrf.mxu0
      %v595 = vadd.f32 %v554, %v594
      %596 = vmatmul.f32.gmra.mxu0 %v217
      %v597 = vpop.f32.mrf.mxu0
      %v598 = vadd.f32 %v557, %v597
      %599 = vmatmul.f32.gmra.mxu0 %v224
      %v600 = vpop.f32.mrf.mxu0
      %v601 = vadd.f32 %v560, %v600
      %602 = vmatmul.f32.gmra.mxu0 %v231
      %v603 = vpop.f32.mrf.mxu0
      %v604 = vadd.f32 %v563, %v603
      %605 = vdwg.mxu0
      %606 = vmatpush.msra.mxu0 0.0
      %607 = vmatpush.msra.mxu0 0.0
      %608 = vmatpush.msra.mxu0 0.0
      %609 = vmatpush.msra.mxu0 0.0
      %610 = vmatpush.msra.mxu0 0.0
      %611 = vmatpush.msra.mxu0 0.0
      %612 = vmatpush.msra.mxu0 0.0
      %613 = vmatpush.msra.mxu0 0.0
      %614 = vmatpush.msra.mxu0 0.0
      %615 = vmatpush.msra.mxu0 0.0
      %616 = vmatpush.msra.mxu0 0.0
      %617 = vmatpush.msra.mxu0 0.0
      %618 = vmatpush.msra.mxu0 0.0
      %619 = vmatpush.msra.mxu0 0.0
      %620 = vmatpush.msra.mxu0 %v330
      %621 = vmatpush.msra.mxu0 %v329
      %622 = vmatmul.f32.gmra.mxu0 %v337
      %v623 = vpop.f32.mrf.mxu0
      %v624 = vadd.f32 %v583, %v623
      %625 = vmatmul.f32.gmra.mxu0 %v340
      %v626 = vpop.f32.mrf.mxu0
      %v627 = vadd.f32 %v586, %v626
      %628 = vmatmul.f32.gmra.mxu0 %v343
      %v629 = vpop.f32.mrf.mxu0
      %v630 = vadd.f32 %v589, %v629
      %631 = vmatmul.f32.gmra.mxu0 %v346
      %v632 = vpop.f32.mrf.mxu0
      %v633 = vadd.f32 %v592, %v632
      %634 = vmatmul.f32.gmra.mxu0 %v349
      %v635 = vpop.f32.mrf.mxu0
      %v636 = vadd.f32 %v595, %v635
      %637 = vmatmul.f32.gmra.mxu0 %v352
      %v638 = vpop.f32.mrf.mxu0
      %v639 = vadd.f32 %v598, %v638
      %640 = vmatmul.f32.gmra.mxu0 %v355
      %v641 = vpop.f32.mrf.mxu0
      %v642 = vadd.f32 %v601, %v641
      %643 = vmatmul.f32.gmra.mxu0 %v358
      %v644 = vpop.f32.mrf.mxu0
      %v645 = vadd.f32 %v604, %v644
      %646 = vdwg.mxu0
      %vm647 = vcmask 80896
      %648 = vst.msk [vmem:[%s175] sm:$0xff] %vm647, %v624
      %649 = vst.msk [vmem:[%s175 + $0x8] sm:$0xff] %vm647, %v627
      %650 = vst.msk [vmem:[%s175 + $0x10] sm:$0xff] %vm647, %v630
      %651 = vst.msk [vmem:[%s175 + $0x18] sm:$0xff] %vm647, %v633
      %652 = vst.msk [vmem:[%s175 + $0x20] sm:$0xff] %vm647, %v636
      %653 = vst.msk [vmem:[%s175 + $0x28] sm:$0xff] %vm647, %v639
      %654 = vst.msk [vmem:[%s175 + $0x30] sm:$0xff] %vm647, %v642
      %655 = vst.msk [vmem:[%s175 + $0x38] sm:$0xff] %vm647, %v645
      %s656 = smul.u32 8, %s14
      %p657 = scmp.lt.s32.totalorder %s656, 15
      %s658 = scalar_select %p657, %s656, 15
      %s659 = smul.addr %s658, 8
      %s660 = scalar_lea.vmem %s3, %s659
      // Predicated region
      $region33: #{tpu_custom_call.1} parent=31 // pred_check
        %p661 = pneg %p100
      $region34: #{tpu_custom_call.1} parent=31 // pred_check_branch
        %663 = sbr.rel (%p661) target = $region36
      $region35: #{tpu_custom_call.1} parent=31 // pred_region
        %s664 = smul.u32 8, %s14
      $region36: #{tpu_custom_call.1} parent=31 // pred_fallthru
        _
    $region32: #{tpu_custom_call.1} parent=5 // pred_fallthru
      _
    %p665 = scmp.le.s32.totalorder 2, %s9
    // Predicated region
    $region37: #{tpu_custom_call.1} parent=5 // pred_check
      %p666 = pneg %p665
    $region38: #{tpu_custom_call.1} parent=5 // pred_check_branch
      %668 = sbr.rel (%p666) target = $region40
    $region39: #{tpu_custom_call.1} parent=5 // pred_region
      %s669 = ssub.s32 %s9, 2
      // Predicated region
      $region41: #{tpu_custom_call.1} parent=39 // pred_check
        %p670 = pneg %p106
      $region42: #{tpu_custom_call.1} parent=39 // pred_check_branch
        %672 = sbr.rel (%p670) target = $region44
      $region43: #{tpu_custom_call.1} parent=39 // pred_region
        %s673 = smul.u32 8, %s15
        %p674 = scmp.lt.s32.totalorder %s673, 15
        %s675 = scalar_select %p674, %s673, 15
        %s676 = smul.addr %s675, 8
        %s677 = scalar_lea.vmem %s3, %s676
      $region44: #{tpu_custom_call.1} parent=39 // pred_fallthru
        _
    $region40: #{tpu_custom_call.1} parent=5 // pred_fallthru
      _
  $region6: #{tpu_custom_call.1} parent=0 // loop_footer
    %s13 = sadd.s32 1, %s9
  $region7: #{tpu_custom_call.1} parent=0 // loop_footer_branch
    %8 = sbr.rel target = $region3
  $region8: #{tpu_custom_call.1} parent=0 // loop_exit
    _

</llo_original>
